<compile_context>
chip_gen: v6e
topology: v6e:2x2x1
jax: 0.10.0
libtpu: 0.0.40
codegen_flags: <defaults>
</compile_context>

<pallas_src>
import functools
import math

import jax
import jax.numpy as jnp
from jax.experimental import pallas as pl
from jax.experimental.pallas import tpu as pltpu


def _round_up(x: int, m: int) -> int:
    return (x + m - 1) // m * m


def _cdiv(a: int, b: int) -> int:
    return (a + b - 1) // b


def classifier_kernel(x_ref, w_enc_ref, b_enc_ref, w_cls_ref, b_cls_ref,
                      feat_ref, pred_ref):
    # x_ref:     (TM, K)    f32    batch tile of flattened inputs
    # w_enc_ref: (K, Np)    bf16   encoder weight (lane-padded), VMEM-resident
    # b_enc_ref: (1, Np)    f32    (padded columns are exactly zero)
    # w_cls_ref: (Np, Lp)   bf16   classifier weight (lane-padded)
    # b_cls_ref: (1, Lp)    f32
    # feat_ref:  (TM, num_output) f32   unpadded store
    # pred_ref:  (TM, label_num)  f32   unpadded store
    n_out = feat_ref.shape[-1]
    n_cls = pred_ref.shape[-1]

    # In-kernel bf16 cast of the f32 tile (VPU work, hidden under the MXU).
    x = x_ref[...].astype(jnp.bfloat16)

    # Feature encoder: bf16 MXU matmul, f32 accumulation.
    feat = jnp.dot(x, w_enc_ref[...], preferred_element_type=jnp.float32)
    # Bias add + ReLU in f32 on the VPU (no bf16 elementwise on v5e).
    feat = jnp.maximum(feat + b_enc_ref[...], 0.0)
    # Store only the real feature columns (padded columns are exact zeros).
    feat_ref[...] = feat[:, :n_out]

    # prediction = self.classifier(features): cast only the MXU operand.
    pred = jnp.dot(feat.astype(w_cls_ref.dtype), w_cls_ref[...],
                   preferred_element_type=jnp.float32)
    pred_ref[...] = (pred + b_cls_ref[...])[:, :n_cls]


def prepare_classifier_params(w_enc, b_enc, w_cls, b_cls):
    """One-time (init-time) lane-padding + bf16 cast of the weights.

    Hoisted out of the forward so every call does NOT pay an extra HBM
    read+write pass over the weight matrices before the kernel starts.
    """
    k, num_output = w_enc.shape
    label_num = w_cls.shape[1]
    n_p = _round_up(num_output, 128)
    l_p = _round_up(label_num, 128)

    w_enc_p = jnp.zeros((k, n_p), jnp.bfloat16).at[:, :num_output].set(
        w_enc.astype(jnp.bfloat16))
    b_enc_p = jnp.zeros((1, n_p), jnp.float32).at[:, :num_output].set(
        b_enc.reshape(1, -1).astype(jnp.float32))
    w_cls_p = jnp.zeros((n_p, l_p), jnp.bfloat16).at[:num_output, :label_num].set(
        w_cls.astype(jnp.bfloat16))
    b_cls_p = jnp.zeros((1, l_p), jnp.float32).at[:, :label_num].set(
        b_cls.reshape(1, -1).astype(jnp.float32))
    return w_enc_p, b_enc_p, w_cls_p, b_cls_p, num_output, label_num


def _pick_tm(batch: int, tm_max: int) -> int:
    """Batch tile size.

    Keep >=2 grid programs when possible so ("parallel",) can shard the batch
    axis across v7x's two TensorCores; only grow past 256 when >=4 programs
    remain.  Always a multiple of 8 (sublane) and >= 8.
    """
    tm = min(tm_max, _round_up(_cdiv(batch, 2), 8))
    if tm > 256 and _cdiv(batch, tm) < 4:
        tm = 256
    return max(tm, 8)


@functools.partial(jax.jit,
                   static_argnames=("num_output", "label_num", "tm_max"))
def classifier_forward(x, w_enc_p, b_enc_p, w_cls_p, b_cls_p, *,
                       num_output: int, label_num: int, tm_max: int = 512):
    """x: (batch, num_input, in_time) f32. Returns (features, prediction) f32."""
    batch = x.shape[0]
    x2d = x.reshape(batch, -1)          # flatten (C, T); view, no HBM pass
    k = x2d.shape[1]
    n_p = w_enc_p.shape[1]
    l_p = w_cls_p.shape[1]

    tm = _pick_tm(batch, tm_max)
    grid = (_cdiv(batch, tm),)          # partial last block, masked writes

    cost = pl.CostEstimate(
        flops=2 * batch * k * n_p + 2 * batch * n_p * l_p,
        transcendentals=0,
        bytes_accessed=(x2d.size * 4
                        + w_enc_p.size * 2 + w_cls_p.size * 2
                        + b_enc_p.size * 4 + b_cls_p.size * 4
                        + batch * num_output * 4 + batch * label_num * 4),
    )

    feat, pred = pl.pallas_call(
        classifier_kernel,
        out_shape=(
            jax.ShapeDtypeStruct((batch, num_output), jnp.float32),
            jax.ShapeDtypeStruct((batch, label_num), jnp.float32),
        ),
        grid_spec=pltpu.PrefetchScalarGridSpec(
            num_scalar_prefetch=0,
            grid=grid,
            in_specs=[
                pl.BlockSpec((tm, k), lambda i: (i, 0)),      # x batch tile (f32)
                pl.BlockSpec((k, n_p), lambda i: (0, 0)),     # enc weight (resident)
                pl.BlockSpec((1, n_p), lambda i: (0, 0)),     # enc bias (resident)
                pl.BlockSpec((n_p, l_p), lambda i: (0, 0)),   # cls weight (resident)
                pl.BlockSpec((1, l_p), lambda i: (0, 0)),     # cls bias (resident)
            ],
            out_specs=(
                pl.BlockSpec((tm, num_output), lambda i: (i, 0)),
                pl.BlockSpec((tm, label_num), lambda i: (i, 0)),
            ),
        ),
        compiler_params=pltpu.CompilerParams(
            dimension_semantics=("parallel",),
            vmem_limit_bytes=32 * 1024 * 1024,
        ),
        cost_estimate=cost,
    )(x2d, w_enc_p, b_enc_p, w_cls_p, b_cls_p)

    return feat, pred


def _linear_init(key, fan_in, fan_out):
    """Deterministic PyTorch-style nn.Linear init: U(-1/sqrt(fan_in), +)."""
    kw, kb = jax.random.split(key)
    bound = 1.0 / math.sqrt(fan_in)
    # Stored already transposed relative to PyTorch: (fan_in, fan_out).
    w = jax.random.uniform(kw, (fan_in, fan_out), jnp.float32, -bound, bound)
    b = jax.random.uniform(kb, (fan_out,), jnp.float32, -bound, bound)
    return w, b


if __name__ == "__main__":
    # Small shapes consistent with the module's forward contract.
    batch, num_input, in_time = 8, 16, 4     # input (batch, num_input, in_time)
    num_output = 32                          # embedding / feature dimension
    label_num = 10                           # set via set_output_num(label_num)

    key = jax.random.PRNGKey(0)
    k_x, k_enc, k_cls = jax.random.split(key, 3)

    x = jax.random.normal(k_x, (batch, num_input, in_time), jnp.float32)
    w_enc, b_enc = _linear_init(k_enc, num_input * in_time, num_output)
    w_cls, b_cls = _linear_init(k_cls, num_output, label_num)

    # One-time padding/casting of parameters (hoisted out of the forward).
    (w_enc_p, b_enc_p, w_cls_p, b_cls_p,
     n_out, n_cls) = prepare_classifier_params(w_enc, b_enc, w_cls, b_cls)

    feat, pred = classifier_forward(x, w_enc_p, b_enc_p, w_cls_p, b_cls_p,
                                    num_output=n_out, label_num=n_cls)
    jax.block_until_ready((feat, pred))

    assert feat.shape == (batch, num_output)
    assert pred.shape == (batch, label_num)

    # Reference with matched bf16 MXU operands / f32 accumulation (tight).
    x2d = x.reshape(batch, -1)
    feat_ref = jnp.maximum(
        jnp.dot(x2d.astype(jnp.bfloat16), w_enc.astype(jnp.bfloat16),
                preferred_element_type=jnp.float32) + b_enc, 0.0)
    pred_ref = jnp.dot(feat_ref.astype(jnp.bfloat16), w_cls.astype(jnp.bfloat16),
                       preferred_element_type=jnp.float32) + b_cls
    assert jnp.allclose(feat, feat_ref, atol=1e-4, rtol=1e-4)
    assert jnp.allclose(pred, pred_ref, atol=1e-4, rtol=1e-4)

    # Full-f32 semantics check (loose: bounds bf16 operand rounding).
    feat_f32 = jnp.maximum(x2d @ w_enc + b_enc, 0.0)
    pred_f32 = feat_f32 @ w_cls + b_cls
    assert jnp.allclose(feat, feat_f32, atol=5e-2, rtol=5e-2)
    assert jnp.allclose(pred, pred_f32, atol=5e-2, rtol=5e-2)

    print("KERNEL_OK")
</pallas_src>

<mosaic_0001>
module attributes {stable_mosaic.version = 11 : i64} {
  func.func @classifier_kernel(%arg0: i32, %arg1: memref<8x64xf32, #tpu.memory_space<vmem>>, %arg2: memref<64x128xbf16, #tpu.memory_space<vmem>>, %arg3: memref<1x128xf32, #tpu.memory_space<vmem>>, %arg4: memref<128x128xbf16, #tpu.memory_space<vmem>>, %arg5: memref<1x128xf32, #tpu.memory_space<vmem>>, %arg6: memref<8x32xf32, #tpu.memory_space<vmem>>, %arg7: memref<8x10xf32, #tpu.memory_space<vmem>>) attributes {dimension_semantics = [#tpu.dimension_semantics<parallel>], iteration_bounds = array<i64: 1>, scalar_prefetch = 0 : i64, scratch_operands = 0 : i64, tpu.core_type = #tpu.core_type<tc>, window_params = [{transform_indices = @transform_0, window_bounds = array<i64: 8, 64>}, {pipeline_mode = #tpu.pipeline_mode<synchronous>, transform_indices = @transform_1, window_bounds = array<i64: 64, 128>}, {pipeline_mode = #tpu.pipeline_mode<synchronous>, transform_indices = @transform_2, window_bounds = array<i64: 1, 128>}, {pipeline_mode = #tpu.pipeline_mode<synchronous>, transform_indices = @transform_3, window_bounds = array<i64: 128, 128>}, {pipeline_mode = #tpu.pipeline_mode<synchronous>, transform_indices = @transform_4, window_bounds = array<i64: 1, 128>}, {transform_indices = @transform_5, window_bounds = array<i64: 8, 32>}, {transform_indices = @transform_6, window_bounds = array<i64: 8, 10>}]} {
    %c0 = arith.constant 0 : index
    %c0_0 = arith.constant 0 : index
    %0 = vector.load %arg1[%c0, %c0_0] : memref<8x64xf32, #tpu.memory_space<vmem>>, vector<8x64xf32>
    %1 = arith.truncf %0 : vector<8x64xf32> to vector<8x64xbf16>
    %c0_1 = arith.constant 0 : index
    %c0_2 = arith.constant 0 : index
    %2 = vector.load %arg2[%c0_1, %c0_2] : memref<64x128xbf16, #tpu.memory_space<vmem>>, vector<64x128xbf16>
    %cst = arith.constant dense<0.000000e+00> : vector<8x128xf32>
    %3 = tpu.matmul %1, %2, %cst {dimension_numbers = #tpu.dot_dimension_numbers<[1], [0], [0], [1], [0, 0, 1, 1], [], []>} : vector<8x64xbf16>, vector<64x128xbf16>, vector<8x128xf32> -> vector<8x128xf32>
    %c0_3 = arith.constant 0 : index
    %c0_4 = arith.constant 0 : index
    %4 = vector.load %arg3[%c0_3, %c0_4] : memref<1x128xf32, #tpu.memory_space<vmem>>, vector<1x128xf32>
    %5 = vector.broadcast %4 : vector<1x128xf32> to vector<8x128xf32>
    %6 = arith.addf %3, %5 : vector<8x128xf32>
    %cst_5 = arith.constant 0.000000e+00 : f32
    %7 = vector.broadcast %cst_5 : f32 to vector<8x128xf32>
    %8 = arith.maximumf %6, %7 : vector<8x128xf32>
    %9 = vector.extract_strided_slice %8 {offsets = [0, 0], sizes = [8, 32], strides = [1, 1]} : vector<8x128xf32> to vector<8x32xf32>
    %c0_6 = arith.constant 0 : index
    %c0_7 = arith.constant 0 : index
    %10 = vector.load %arg6[%c0_6, %c0_7] : memref<8x32xf32, #tpu.memory_space<vmem>>, vector<8x32xf32>
    tpu.vector_store %arg6[%c0_6, %c0_7], %9 {strides = array<i32>} : memref<8x32xf32, #tpu.memory_space<vmem>>, vector<8x32xf32>,
    %11 = arith.truncf %8 : vector<8x128xf32> to vector<8x128xbf16>
    %c0_8 = arith.constant 0 : index
    %c0_9 = arith.constant 0 : index
    %12 = vector.load %arg4[%c0_8, %c0_9] : memref<128x128xbf16, #tpu.memory_space<vmem>>, vector<128x128xbf16>
    %cst_10 = arith.constant dense<0.000000e+00> : vector<8x128xf32>
    %13 = tpu.matmul %11, %12, %cst_10 {dimension_numbers = #tpu.dot_dimension_numbers<[1], [0], [0], [1], [0, 0, 1, 1], [], []>} : vector<8x128xbf16>, vector<128x128xbf16>, vector<8x128xf32> -> vector<8x128xf32>
    %c0_11 = arith.constant 0 : index
    %c0_12 = arith.constant 0 : index
    %14 = vector.load %arg5[%c0_11, %c0_12] : memref<1x128xf32, #tpu.memory_space<vmem>>, vector<1x128xf32>
    %15 = vector.broadcast %14 : vector<1x128xf32> to vector<8x128xf32>
    %16 = arith.addf %13, %15 : vector<8x128xf32>
    %17 = vector.extract_strided_slice %16 {offsets = [0, 0], sizes = [8, 10], strides = [1, 1]} : vector<8x128xf32> to vector<8x10xf32>
    %c0_13 = arith.constant 0 : index
    %c0_14 = arith.constant 0 : index
    %18 = vector.load %arg7[%c0_13, %c0_14] : memref<8x10xf32, #tpu.memory_space<vmem>>, vector<8x10xf32>
    tpu.vector_store %arg7[%c0_13, %c0_14], %17 {strides = array<i32>} : memref<8x10xf32, #tpu.memory_space<vmem>>, vector<8x10xf32>,
    return
  }
  func.func @transform_0(%arg0: i32) -> (i32, i32) {
    %c0_i32 = arith.constant 0 : i32
    %c0_i32_0 = arith.constant 0 : i32
    return %arg0, %c0_i32 : i32, i32
  }
  func.func @transform_1(%arg0: i32) -> (i32, i32) {
    %c0_i32 = arith.constant 0 : i32
    %c0_i32_0 = arith.constant 0 : i32
    %c0_i32_1 = arith.constant 0 : i32
    return %c0_i32, %c0_i32_0 : i32, i32
  }
  func.func @transform_2(%arg0: i32) -> (i32, i32) {
    %c0_i32 = arith.constant 0 : i32
    %c0_i32_0 = arith.constant 0 : i32
    %c0_i32_1 = arith.constant 0 : i32
    return %c0_i32, %c0_i32_0 : i32, i32
  }
  func.func @transform_3(%arg0: i32) -> (i32, i32) {
    %c0_i32 = arith.constant 0 : i32
    %c0_i32_0 = arith.constant 0 : i32
    %c0_i32_1 = arith.constant 0 : i32
    return %c0_i32, %c0_i32_0 : i32, i32
  }
  func.func @transform_4(%arg0: i32) -> (i32, i32) {
    %c0_i32 = arith.constant 0 : i32
    %c0_i32_0 = arith.constant 0 : i32
    %c0_i32_1 = arith.constant 0 : i32
    return %c0_i32, %c0_i32_0 : i32, i32
  }
  func.func @transform_5(%arg0: i32) -> (i32, i32) {
    %c0_i32 = arith.constant 0 : i32
    %c0_i32_0 = arith.constant 0 : i32
    return %arg0, %c0_i32 : i32, i32
  }
  func.func @transform_6(%arg0: i32) -> (i32, i32) {
    %c0_i32 = arith.constant 0 : i32
    %c0_i32_0 = arith.constant 0 : i32
    return %arg0, %c0_i32 : i32, i32
  }
}

</mosaic_0001>

<llo_original>
// kernel: classifier_forward.1
$region0: #{classifier_forward.1}
  #allocation0 [shape = 'u32[]', space=smem, size = 0x4, offset = 0x4, fixed_abs, tag = 'smem constant byte address 0x4 - core index']
  #allocation1 [shape = 'u32[144,128]{1,0:T(1,128)}', space=vmem, size = 0x12000, scoped, tag = 'internal scratch']
  %s0 = inlined_call_operand.vmem [shape: f32[8,64], index: 0, kind: input, shape index: {}]
  %s1 = inlined_call_operand.vmem [shape: bf16[64,128], index: 1, kind: input, shape index: {}]
  %s2 = inlined_call_operand.vmem [shape: f32[1,128], index: 2, kind: input, shape index: {}]
  %s3 = inlined_call_operand.vmem [shape: bf16[128,128], index: 3, kind: input, shape index: {}]
  %s4 = inlined_call_operand.vmem [shape: f32[1,128], index: 4, kind: input, shape index: {}]
  %s5 = inlined_call_operand.hbm [shape: f32[8,32], index: 5, kind: output, shape index: {0}]
  %s6 = inlined_call_operand.hbm [shape: f32[8,10], index: 6, kind: output, shape index: {1}]
  %7 = xla_tuple %s5, %s6
  %s8 = sld [smem:[#allocation0]]
  $region38: #{classifier_forward.1} parent=0
    _
  %s10 = ssub.s32 1, %s8
  %s11 = scalar_select 0, %s10, %s8
  $region1: #{classifier_forward.1} parent=0
    #allocation2 [shape = 'u8[4096]{0}', space=vmem, size = 0x1000, scoped, tag = 'output window, operand 0, single buffered']
    #allocation3 [shape = 's32[1]{0}', space=sflag, size = 0x4, scoped, tag = 'scoped memory for classifier_forward.1']
    #allocation4 [shape = 'u8[4096]{0}', space=vmem, size = 0x1000, scoped, tag = 'output window, operand 1, single buffered']
    #allocation5 [shape = 's32[1]{0}', space=sflag, size = 0x4, scoped, tag = 'scoped memory for classifier_forward.1']
    %12 = vsyncpa [#allocation3], 0
    %13 = vsyncpa [#allocation5], 0
    // Predicated region
    $region2: #{classifier_forward.1} parent=1 // pred_check
      _
    $region3: #{classifier_forward.1} parent=1 // pred_check_branch
      %15 = sbr.rel (0) target = $region5
    $region4: #{classifier_forward.1} parent=1 // pred_region
      _
    $region5: #{classifier_forward.1} parent=1 // pred_fallthru
      _
    // Predicated region
    $region6: #{classifier_forward.1} parent=1 // pred_check
      _
    $region7: #{classifier_forward.1} parent=1 // pred_check_branch
      %17 = sbr.rel (0) target = $region9
    $region8: #{classifier_forward.1} parent=1 // pred_region
      _
    $region9: #{classifier_forward.1} parent=1 // pred_fallthru
      _
    // Predicated region
    $region10: #{classifier_forward.1} parent=1 // pred_check
      _
    $region11: #{classifier_forward.1} parent=1 // pred_check_branch
      %19 = sbr.rel (0) target = $region13
    $region12: #{classifier_forward.1} parent=1 // pred_region
      _
    $region13: #{classifier_forward.1} parent=1 // pred_fallthru
      _
    // Predicated region
    $region14: #{classifier_forward.1} parent=1 // pred_check
      _
    $region15: #{classifier_forward.1} parent=1 // pred_check_branch
      %21 = sbr.rel (0) target = $region17
    $region16: #{classifier_forward.1} parent=1 // pred_region
      _
    $region17: #{classifier_forward.1} parent=1 // pred_fallthru
      _
    // Predicated region
    $region18: #{classifier_forward.1} parent=1 // pred_check
      _
    $region19: #{classifier_forward.1} parent=1 // pred_check_branch
      %23 = sbr.rel (0) target = $region21
    $region20: #{classifier_forward.1} parent=1 // pred_region
      _
    $region21: #{classifier_forward.1} parent=1 // pred_fallthru
      _
    %v25 = vld [vmem:[%s0] sm:$0xff]
    %v26 = vpack.c.bf16 %v25, %v25
    %v27 = vld [vmem:[%s1] sm:$0xf]
    %v28 = vld [vmem:[%s1 + $0x4] sm:$0xf]
    %v29 = vld [vmem:[%s1 + $0x8] sm:$0xf]
    %v30 = vld [vmem:[%s1 + $0xc] sm:$0xf]
    %v31 = vld [vmem:[%s1 + $0x10] sm:$0xf]
    %v32 = vld [vmem:[%s1 + $0x14] sm:$0xf]
    %v33 = vld [vmem:[%s1 + $0x18] sm:$0xf]
    %v34 = vld [vmem:[%s1 + $0x1c] sm:$0xf]
    %v35 = vld [vmem:[%s2] sm:$0x1]
    %v37 = vlaneseq
    %v38 = vshrl.u32 %v37, 7
    %v39 = vsub.s32 0, %v38
    %v40 = vrot.slane %v35, %v39
    %v50 = vunpack.c.l.b16 %v27
    %v51 = vunpack.c.l.b16 %v28
    %v52 = vunpack.c.l.b16 %v29
    %v53 = vunpack.c.l.b16 %v30
    %v54 = vunpack.c.l.b16 %v31
    %v55 = vunpack.c.l.b16 %v32
    %v56 = vunpack.c.l.b16 %v33
    %v57 = vunpack.c.l.b16 %v34
    %v58 = vpack.c.b16 %v51, %v50
    %v59 = vpack.c.b16 %v53, %v52
    %v60 = vpack.c.b16 %v55, %v54
    %v61 = vpack.c.b16 %v57, %v56
    %vm66 = vcmask 523264
    %v68 = vsel %vm66, %v26, 0
    %70 = vmatprep.subr.bf16.mxu0 0
    %71 = vmatpush1.bf16.msra.mxu0 0
    %72 = vmatprep.subr.bf16.mxu0 0
    %73 = vmatpush1.bf16.msra.mxu0 0
    %74 = vmatprep.subr.bf16.mxu0 0
    %75 = vmatpush1.bf16.msra.mxu0 0
    %76 = vmatprep.subr.bf16.mxu0 0
    %77 = vmatpush1.bf16.msra.mxu0 0
    %78 = vmatprep.subr.bf16.mxu0 0
    %79 = vmatpush1.bf16.msra.mxu0 %v61
    %80 = vmatprep.subr.bf16.mxu0 0
    %81 = vmatpush1.bf16.msra.mxu0 %v60
    %82 = vmatprep.subr.bf16.mxu0 0
    %83 = vmatpush1.bf16.msra.mxu0 %v59
    %84 = vmatprep.subr.bf16.mxu0 0
    %85 = vmatpush1.bf16.msra.mxu0 %v58
    %86 = vmatprep.subr.bf16.mxu0 0
    %87 = vmatpush2.bf16.msra.mxu0 0
    %88 = vmatprep.subr.bf16.mxu0 0
    %89 = vmatpush2.bf16.msra.mxu0 0
    %90 = vmatprep.subr.bf16.mxu0 0
    %91 = vmatpush2.bf16.msra.mxu0 0
    %92 = vmatprep.subr.bf16.mxu0 0
    %93 = vmatpush2.bf16.msra.mxu0 0
    %94 = vmatprep.subr.bf16.mxu0 0
    %95 = vmatpush2.bf16.msra.mxu0 0
    %96 = vmatprep.subr.bf16.mxu0 0
    %97 = vmatpush2.bf16.msra.mxu0 0
    %98 = vmatprep.subr.bf16.mxu0 0
    %99 = vmatpush2.bf16.msra.mxu0 0
    %100 = vmatprep.subr.bf16.mxu0 0
    %101 = vmatpush2.bf16.msra.mxu0 0
    %102 = vmatprep.mubr.bf16.mxu0 0
    %103 = vmatmul.mubr.bf16.gmra.mxu0 %v68
    %v104 = vpop.f32.mrf.mxu0
    %v105 = vadd.f32 %v40, %v104
    %v106 = vpop.f32.mrf.mxu0
    %v107 = vpop.f32.mrf.mxu0
    %v108 = vpop.f32.mrf.mxu0
    %109 = vdwg.mxu0
    %v110 = vmax.f32 %v105, 0.0
    %vm111 = vcmask 261120
    %112 = vst.msk [vmem:[#allocation2] sm:$0xff] %vm111, %v110
    %v113 = vpack.c.bf16 %v110, %v110
    %v114 = vld [vmem:[%s3] sm:$0xf]
    %v115 = vld [vmem:[%s3 + $0x4] sm:$0xf]
    %v116 = vld [vmem:[%s3 + $0x8] sm:$0xf]
    %v117 = vld [vmem:[%s3 + $0xc] sm:$0xf]
    %v118 = vld [vmem:[%s3 + $0x10] sm:$0xf]
    %v119 = vld [vmem:[%s3 + $0x14] sm:$0xf]
    %v120 = vld [vmem:[%s3 + $0x18] sm:$0xf]
    %v121 = vld [vmem:[%s3 + $0x1c] sm:$0xf]
    %v122 = vld [vmem:[%s3 + $0x20] sm:$0xf]
    %v123 = vld [vmem:[%s3 + $0x24] sm:$0xf]
    %v124 = vld [vmem:[%s3 + $0x28] sm:$0xf]
    %v125 = vld [vmem:[%s3 + $0x2c] sm:$0xf]
    %v126 = vld [vmem:[%s3 + $0x30] sm:$0xf]
    %v127 = vld [vmem:[%s3 + $0x34] sm:$0xf]
    %v128 = vld [vmem:[%s3 + $0x38] sm:$0xf]
    %v129 = vld [vmem:[%s3 + $0x3c] sm:$0xf]
    %v130 = vld [vmem:[%s4] sm:$0x1]
    %v132 = vlaneseq
    %v133 = vshrl.u32 %v132, 7
    %v134 = vsub.s32 0, %v133
    %v135 = vrot.slane %v130, %v134
    %v153 = vunpack.c.l.b16 %v114
    %v154 = vunpack.c.l.b16 %v115
    %v155 = vunpack.c.l.b16 %v116
    %v156 = vunpack.c.l.b16 %v117
    %v157 = vunpack.c.l.b16 %v118
    %v158 = vunpack.c.l.b16 %v119
    %v159 = vunpack.c.l.b16 %v120
    %v160 = vunpack.c.l.b16 %v121
    %v161 = vunpack.c.l.b16 %v122
    %v162 = vunpack.c.l.b16 %v123
    %v163 = vunpack.c.l.b16 %v124
    %v164 = vunpack.c.l.b16 %v125
    %v165 = vunpack.c.l.b16 %v126
    %v166 = vunpack.c.l.b16 %v127
    %v167 = vunpack.c.l.b16 %v128
    %v168 = vunpack.c.l.b16 %v129
    %v169 = vpack.c.b16 %v154, %v153
    %v170 = vpack.c.b16 %v156, %v155
    %v171 = vpack.c.b16 %v158, %v157
    %v172 = vpack.c.b16 %v160, %v159
    %v173 = vpack.c.b16 %v162, %v161
    %v174 = vpack.c.b16 %v164, %v163
    %v175 = vpack.c.b16 %v166, %v165
    %v176 = vpack.c.b16 %v168, %v167
    %185 = vmatprep.subr.bf16.mxu0 0
    %186 = vmatpush1.bf16.msra.mxu0 %v176
    %187 = vmatprep.subr.bf16.mxu0 0
    %188 = vmatpush1.bf16.msra.mxu0 %v175
    %189 = vmatprep.subr.bf16.mxu0 0
    %190 = vmatpush1.bf16.msra.mxu0 %v174
    %191 = vmatprep.subr.bf16.mxu0 0
    %192 = vmatpush1.bf16.msra.mxu0 %v173
    %193 = vmatprep.subr.bf16.mxu0 0
    %194 = vmatpush1.bf16.msra.mxu0 %v172
    %195 = vmatprep.subr.bf16.mxu0 0
    %196 = vmatpush1.bf16.msra.mxu0 %v171
    %197 = vmatprep.subr.bf16.mxu0 0
    %198 = vmatpush1.bf16.msra.mxu0 %v170
    %199 = vmatprep.subr.bf16.mxu0 0
    %200 = vmatpush1.bf16.msra.mxu0 %v169
    %201 = vmatprep.subr.bf16.mxu0 0
    %202 = vmatpush2.bf16.msra.mxu0 0
    %203 = vmatprep.subr.bf16.mxu0 0
    %204 = vmatpush2.bf16.msra.mxu0 0
    %205 = vmatprep.subr.bf16.mxu0 0
    %206 = vmatpush2.bf16.msra.mxu0 0
    %207 = vmatprep.subr.bf16.mxu0 0
    %208 = vmatpush2.bf16.msra.mxu0 0
    %209 = vmatprep.subr.bf16.mxu0 0
    %210 = vmatpush2.bf16.msra.mxu0 0
    %211 = vmatprep.subr.bf16.mxu0 0
    %212 = vmatpush2.bf16.msra.mxu0 0
    %213 = vmatprep.subr.bf16.mxu0 0
    %214 = vmatpush2.bf16.msra.mxu0 0
    %215 = vmatprep.subr.bf16.mxu0 0
    %216 = vmatpush2.bf16.msra.mxu0 0
    %217 = vmatprep.mubr.bf16.mxu0 0
    %218 = vmatmul.mubr.bf16.gmra.mxu0 %v113
    %v219 = vpop.f32.mrf.mxu0
    %v220 = vadd.f32 %v135, %v219
    %v221 = vpop.f32.mrf.mxu0
    %v222 = vpop.f32.mrf.mxu0
    %v223 = vpop.f32.mrf.mxu0
    %224 = vdwg.mxu0
    %vm225 = vcmask 80896
    %226 = vst.msk [vmem:[#allocation4] sm:$0xff] %vm225, %v220
    // Predicated region
    $region22: #{classifier_forward.1} parent=1 // pred_check
      _
    $region23: #{classifier_forward.1} parent=1 // pred_check_branch
      %228 = sbr.rel (0) target = $region25
    $region24: #{classifier_forward.1} parent=1 // pred_region
      %s230 = ssub.s32 128, 128
      %231 = vsyncadd [#allocation3], %s230
      %s233 = sshll.u32 [#allocation2], 4
      %s234 = int_to_ptr.vmem [resolvable:$true] %s233
      %236 = dma.vmem_to_hbm [thread:$0]  %s234, 128, %s5, [#allocation3]
    $region25: #{classifier_forward.1} parent=1 // pred_fallthru
      _
    // Predicated region
    $region26: #{classifier_forward.1} parent=1 // pred_check
      _
    $region27: #{classifier_forward.1} parent=1 // pred_check_branch
      %238 = sbr.rel (0) target = $region29
    $region28: #{classifier_forward.1} parent=1 // pred_region
      %s240 = ssub.s32 128, 128
      %241 = vsyncadd [#allocation5], %s240
      %s243 = sshll.u32 [#allocation4], 4
      %s244 = int_to_ptr.vmem [resolvable:$true] %s243
      %246 = dma.vmem_to_hbm [thread:$0]  %s244, 128, %s6, [#allocation5]
    $region29: #{classifier_forward.1} parent=1 // pred_fallthru
      _
    // Predicated region
    $region30: #{classifier_forward.1} parent=1 // pred_check
      _
    $region31: #{classifier_forward.1} parent=1 // pred_check_branch
      %248 = sbr.rel (0) target = $region33
    $region32: #{classifier_forward.1} parent=1 // pred_region
      %249 = dma.done [#allocation3], 128
    $region33: #{classifier_forward.1} parent=1 // pred_fallthru
      _
    // Predicated region
    $region34: #{classifier_forward.1} parent=1 // pred_check
      _
    $region35: #{classifier_forward.1} parent=1 // pred_check_branch
      %251 = sbr.rel (0) target = $region37
    $region36: #{classifier_forward.1} parent=1 // pred_region
      %252 = dma.done [#allocation5], 128
    $region37: #{classifier_forward.1} parent=1 // pred_fallthru
      _
    %253 = vsyncpa [#allocation3], 1
    %254 = vsyncpa [#allocation5], 1

</llo_original>
